<compile_context>
chip_gen: v7x
topology: tpu7x:2x2x1
jax: 0.10.0
libtpu: 0.0.40
codegen_flags: <defaults>
</compile_context>

<pallas_src>
import jax
import jax.numpy as jnp
from jax.experimental import pallas as pl
from jax.experimental.pallas import tpu as pltpu


# ---------------------------------------------------------------------------
# Pallas kernel: o = x * (1/scale) + (-shift/scale), constants broadcast per row
# ---------------------------------------------------------------------------
def _scaling_kernel(x_ref, a_ref, b_ref, o_ref):
    # x_ref: (tm, tn)   a_ref / b_ref: (tm, 1) f32   o_ref: (tm, tn)
    x = x_ref[...].astype(jnp.float32)
    o_ref[...] = (x * a_ref[...] + b_ref[...]).astype(o_ref.dtype)


# ---------------------------------------------------------------------------
# Helpers
# ---------------------------------------------------------------------------
def _sublane_pack(itemsize):
    # Rows per (8, 128) vreg: f32 -> 8, bf16 -> 16, int8/fp8 -> 32.
    return max(8, 32 // max(int(itemsize), 1))


def _choose_h_fold(R0, H, W, sub):
    """Fold factor hs of H into the row axis when N*C is sublane-sparse."""
    if R0 >= sub:
        return 1
    best = 1
    for hs in range(2, H + 1):
        if H % hs:
            continue
        cols = (H // hs) * W
        if cols < 128:               # never trade lane density for sublane density
            continue
        rows = R0 * hs
        if rows % sub == 0:
            return hs                # smallest fold reaching full sublane density
        if rows <= sub and rows > R0 * best:
            best = hs
    return best


def _vmem_limit_bytes():
    try:
        cap = int(pltpu.get_tpu_info().vmem_capacity_bytes)
    except Exception:
        cap = 64 * 1024 * 1024       # conservative: v7x per-TensorCore VMEM
    return min(3 * cap // 4, 96 * 1024 * 1024)


# ---------------------------------------------------------------------------
# Wrapper
# ---------------------------------------------------------------------------
def scaling_layer(x_nchw, shift, scale):
    """(x - shift) / scale with shift/scale broadcast as (1, C, 1, 1)."""
    N, C, H, W = x_nchw.shape
    dtype = x_nchw.dtype
    itemsize = jnp.dtype(dtype).itemsize
    sub = _sublane_pack(itemsize)

    # --- 2-D view; fold part of H into rows if N*C is sublane-sparse -------
    hs = _choose_h_fold(N * C, H, W, sub)
    rows = N * C * hs
    cols = (H // hs) * W
    x2 = x_nchw.reshape(rows, cols)                      # contiguous -> free view

    # --- fused constants, kept in f32 regardless of activation dtype -------
    scale_f = scale.astype(jnp.float32).reshape(1, C, 1)
    shift_f = shift.astype(jnp.float32).reshape(1, C, 1)
    a_col = jnp.tile(1.0 / scale_f, (N, 1, hs)).reshape(rows, 1)       # 1/scale
    b_col = jnp.tile(-shift_f / scale_f, (N, 1, hs)).reshape(rows, 1)  # -shift/scale

    # --- tile sizes ---------------------------------------------------------
    vmem_limit = _vmem_limit_bytes()
    block_bytes = min(8 * 1024 * 1024, vmem_limit // 6)  # in+out, double-buffered

    tm = rows if rows <= 1024 else 1024                  # multiple of sub, or full dim
    if cols <= 128:
        tn = cols                                        # full last dim (always legal)
    else:
        max_cols = max(128, block_bytes // (tm * itemsize))
        tn = min(cols, (max_cols // 128) * 128)          # lane-dense multiple of 128
    grid = (pl.cdiv(rows, tm), pl.cdiv(cols, tn))        # uneven tails masked by Pallas

    out = pl.pallas_call(
        _scaling_kernel,
        out_shape=jax.ShapeDtypeStruct((rows, cols), dtype),
        grid_spec=pltpu.PrefetchScalarGridSpec(
            num_scalar_prefetch=0,
            grid=grid,
            in_specs=[
                pl.BlockSpec((tm, tn), lambda i, j: (i, j)),   # activations
                pl.BlockSpec((tm, 1), lambda i, j: (i, 0)),    # per-row 1/scale (f32)
                pl.BlockSpec((tm, 1), lambda i, j: (i, 0)),    # per-row -shift/scale
            ],
            out_specs=pl.BlockSpec((tm, tn), lambda i, j: (i, j)),
        ),
        compiler_params=pltpu.CompilerParams(
            dimension_semantics=("parallel", "parallel"),      # megacore-shardable
            vmem_limit_bytes=vmem_limit,
        ),
        cost_estimate=pl.CostEstimate(
            flops=2 * rows * cols,
            bytes_accessed=2 * rows * cols * itemsize + 2 * rows * 4,
            transcendentals=0,
        ),
    )(x2, a_col, b_col)
    return out.reshape(N, C, H, W)


# ---------------------------------------------------------------------------
# Self-test
# ---------------------------------------------------------------------------
if __name__ == "__main__":
    key = jax.random.PRNGKey(0)
    x = jax.random.normal(key, (2, 3, 16, 16), jnp.float32)

    # Buffers exactly as in the PyTorch module.
    shift = jnp.array([0.485, 0.456, 0.406], jnp.float32)
    scale = jnp.array([0.229, 0.224, 0.225], jnp.float32)

    fn = jax.jit(scaling_layer)
    out = jax.block_until_ready(fn(x, shift, scale))

    ref = (x - shift.reshape(1, 3, 1, 1)) / scale.reshape(1, 3, 1, 1)
    assert out.shape == x.shape, (out.shape, x.shape)
    assert bool(jnp.all(jnp.isfinite(out)))
    max_err = float(jnp.max(jnp.abs(out - ref)))
    assert max_err < 1e-5, max_err
    print("KERNEL_OK")
</pallas_src>

<mosaic_0001>
module attributes {stable_mosaic.version = 11 : i64} {
  func.func @_scaling_kernel(%arg0: i32, %arg1: i32, %arg2: memref<6x256xf32, #tpu.memory_space<vmem>>, %arg3: memref<6x1xf32, #tpu.memory_space<vmem>>, %arg4: memref<6x1xf32, #tpu.memory_space<vmem>>, %arg5: memref<6x256xf32, #tpu.memory_space<vmem>>) attributes {dimension_semantics = [#tpu.dimension_semantics<parallel>, #tpu.dimension_semantics<parallel>], iteration_bounds = array<i64: 1, 1>, scalar_prefetch = 0 : i64, scratch_operands = 0 : i64, tpu.core_type = #tpu.core_type<tc>, window_params = [{transform_indices = @transform_0, window_bounds = array<i64: 6, 256>}, {transform_indices = @transform_1, window_bounds = array<i64: 6, 1>}, {transform_indices = @transform_2, window_bounds = array<i64: 6, 1>}, {transform_indices = @transform_3, window_bounds = array<i64: 6, 256>}]} {
    %c0 = arith.constant 0 : index
    %c0_0 = arith.constant 0 : index
    %0 = vector.load %arg2[%c0, %c0_0] : memref<6x256xf32, #tpu.memory_space<vmem>>, vector<6x256xf32>
    %c0_1 = arith.constant 0 : index
    %c0_2 = arith.constant 0 : index
    %1 = vector.load %arg3[%c0_1, %c0_2] : memref<6x1xf32, #tpu.memory_space<vmem>>, vector<6x1xf32>
    %2 = vector.broadcast %1 : vector<6x1xf32> to vector<6x256xf32>
    %3 = arith.mulf %0, %2 : vector<6x256xf32>
    %c0_3 = arith.constant 0 : index
    %c0_4 = arith.constant 0 : index
    %4 = vector.load %arg4[%c0_3, %c0_4] : memref<6x1xf32, #tpu.memory_space<vmem>>, vector<6x1xf32>
    %5 = vector.broadcast %4 : vector<6x1xf32> to vector<6x256xf32>
    %6 = arith.addf %3, %5 : vector<6x256xf32>
    %c0_5 = arith.constant 0 : index
    %c0_6 = arith.constant 0 : index
    %7 = vector.load %arg5[%c0_5, %c0_6] : memref<6x256xf32, #tpu.memory_space<vmem>>, vector<6x256xf32>
    tpu.vector_store %arg5[%c0_5, %c0_6], %6 {strides = array<i32>} : memref<6x256xf32, #tpu.memory_space<vmem>>, vector<6x256xf32>,
    return
  }
  func.func @transform_0(%arg0: i32, %arg1: i32) -> (i32, i32) {
    %c0_i32 = arith.constant 0 : i32
    return %arg0, %arg1 : i32, i32
  }
  func.func @transform_1(%arg0: i32, %arg1: i32) -> (i32, i32) {
    %c0_i32 = arith.constant 0 : i32
    %c0_i32_0 = arith.constant 0 : i32
    return %arg0, %c0_i32 : i32, i32
  }
  func.func @transform_2(%arg0: i32, %arg1: i32) -> (i32, i32) {
    %c0_i32 = arith.constant 0 : i32
    %c0_i32_0 = arith.constant 0 : i32
    return %arg0, %c0_i32 : i32, i32
  }
  func.func @transform_3(%arg0: i32, %arg1: i32) -> (i32, i32) {
    %c0_i32 = arith.constant 0 : i32
    return %arg0, %arg1 : i32, i32
  }
}

</mosaic_0001>

<llo_original>
// kernel: scaling_layer.1
$region0: #{scaling_layer.1}
  #allocation0 [shape = 'u32[]', space=smem, size = 0x4, offset = 0x4, fixed_abs, tag = 'smem constant byte address 0x4 - core index']
  #allocation1 [shape = 'u32[144,128]{1,0:T(1,128)}', space=vmem, size = 0x12000, scoped, tag = 'internal scratch']
  %s0 = inlined_call_operand.vmem [shape: f32[6,256], index: 0, kind: input, shape index: {}]
  %s1 = inlined_call_operand.vmem [shape: f32[6,1], index: 1, kind: input, shape index: {}]
  %s2 = inlined_call_operand.vmem [shape: f32[6,1], index: 2, kind: input, shape index: {}]
  %s3 = inlined_call_operand.vmem [shape: f32[6,256], index: 3, kind: output, shape index: {}]
  %s4 = sld [smem:[#allocation0]]
  $region22: #{scaling_layer.1} parent=0
    _
  %s6 = ssub.s32 1, %s4
  %s7 = scalar_select 0, %s6, %s4
  // Predicated region
  $region2: #{scaling_layer.1} parent=0 // pred_check
    _
  $region3: #{scaling_layer.1} parent=0 // pred_check_branch
    %9 = sbr.rel (0) target = $region5
  $region4: #{scaling_layer.1} parent=0 // pred_region
    _
  $region5: #{scaling_layer.1} parent=0 // pred_fallthru
    _
  // Predicated region
  $region6: #{scaling_layer.1} parent=0 // pred_check
    _
  $region7: #{scaling_layer.1} parent=0 // pred_check_branch
    %11 = sbr.rel (0) target = $region9
  $region8: #{scaling_layer.1} parent=0 // pred_region
    _
  $region9: #{scaling_layer.1} parent=0 // pred_fallthru
    _
  // Predicated region
  $region10: #{scaling_layer.1} parent=0 // pred_check
    _
  $region11: #{scaling_layer.1} parent=0 // pred_check_branch
    %13 = sbr.rel (0) target = $region13
  $region12: #{scaling_layer.1} parent=0 // pred_region
    _
  $region13: #{scaling_layer.1} parent=0 // pred_fallthru
    _
  %v14 = vld [vmem:[%s0] sm:$0x3f]
  %v15 = vld [vmem:[%s0 + $0x8] sm:$0x3f]
  %v16 = vld [vmem:[%s1] sm:$0x3f]
  %18 = vset.pattern.permute.xlu0 0
  %19 = vperm.xlu0 %18, %v16
  %v20 = vpop.permute.xlu0 %19
  %v22 = vmul.f32 %v14, %v20
  %v23 = vmul.f32 %v15, %v20
  %v24 = vld [vmem:[%s2] sm:$0x3f]
  %26 = vset.pattern.permute.xlu0 0
  %27 = vperm.xlu0 %26, %v24
  %v28 = vpop.permute.xlu0 %27
  %v30 = vadd.f32 %v22, %v28
  %v31 = vadd.f32 %v23, %v28
  %32 = vst [vmem:[%s3] sm:$0x3f] %v30
  %33 = vst [vmem:[%s3 + $0x8] sm:$0x3f] %v31
  // Predicated region
  $region14: #{scaling_layer.1} parent=0 // pred_check
    _
  $region15: #{scaling_layer.1} parent=0 // pred_check_branch
    %35 = sbr.rel (0) target = $region17
  $region16: #{scaling_layer.1} parent=0 // pred_region
    _
  $region17: #{scaling_layer.1} parent=0 // pred_fallthru
    _
  // Predicated region
  $region18: #{scaling_layer.1} parent=0 // pred_check
    _
  $region19: #{scaling_layer.1} parent=0 // pred_check_branch
    %37 = sbr.rel (0) target = $region21
  $region20: #{scaling_layer.1} parent=0 // pred_region
    _
  $region21: #{scaling_layer.1} parent=0 // pred_fallthru
    _

</llo_original>
